<compile_context>
chip_gen: v7x
topology: tpu7x:2x2x1
jax: 0.10.0
libtpu: 0.0.40
codegen_flags: <defaults>
</compile_context>

<pallas_src>
import math

import jax
import jax.numpy as jnp
import numpy as np
from jax.experimental import pallas as pl
from jax.experimental.pallas import tpu as pltpu

# ----------------------------- configuration ---------------------------------
BATCH = 2
SEQ = 8
HIDDEN = 32
NUM_HEADS = 4                      # num_attention_heads == num_key_value_heads
HEAD_DIM = HIDDEN // NUM_HEADS     # 8  (HEAD_DIM // 2 == NUM_HEADS, required by rotary)
LN_EPS = 1e-5
ROPE_BASE = 10000.0
N_TOKENS = BATCH * SEQ             # 16 -- whole problem in one grid step
EXP = NUM_HEADS * NUM_HEADS * HEAD_DIM   # 128: expanded (h, g, d) lane layout
OUT_PAD = 128                      # lane-dense padded output width (wrapper slices :HIDDEN)


# ------------------------------ Pallas kernel --------------------------------
def mlha_kernel(x_ref, gamma_ref, beta_ref, w_all_ref, cos_ref, sin_ref,
                seg_ref, grp_ref, grpT_ref, expP_ref, wo_ref, out_ref):
    x = x_ref[...]                                            # (N, HIDDEN) f32

    # ---- LayerNorm (biased variance, like torch.nn.LayerNorm) ----
    mu = jnp.mean(x, axis=-1, keepdims=True)
    xc = x - mu
    var = jnp.mean(xc * xc, axis=-1, keepdims=True)
    h = xc * jax.lax.rsqrt(var + LN_EPS)
    h = h * gamma_ref[...] + beta_ref[...]                    # (1, HIDDEN) broadcast

    # ---- one fused lane-dense projection: [QE | KE | VE | QE_rot | KE_rot | 0] ----
    proj = jnp.dot(h, w_all_ref[...], preferred_element_type=jnp.float32)   # (N, 768)
    main = proj[:, :3 * EXP]                                  # 128-aligned slices
    rot = proj[:, 3 * EXP:]

    # ---- rotary for q & k + v pass-through, one wide FMA (scale already in weights) ----
    qkv = main * cos_ref[...] + rot * sin_ref[...]            # (N, 384) = [QE | KE | VE]
    qe = qkv[:, 0:EXP]
    ke = qkv[:, EXP:2 * EXP]
    ve = qkv[:, 2 * EXP:3 * EXP]

    # ---- all H*H cross-head scores with one matmul over the 128-wide product ----
    scores = jnp.dot(qe * ke, seg_ref[...],
                     preferred_element_type=jnp.float32)      # (N, H*H)

    # ---- grouped softmax over g (one max, one exp, one approx reciprocal) ----
    # Shifting by the global row max is mathematically identical to per-group max.
    m = jnp.max(scores, axis=-1, keepdims=True)
    e = jnp.exp(scores - m)                                   # single EUP push
    denom = jnp.dot(e, grp_ref[...], preferred_element_type=jnp.float32)        # (N, H)
    inv = pl.reciprocal(denom, approx=True)
    probs = e * jnp.dot(inv, grpT_ref[...], preferred_element_type=jnp.float32)  # (N, H*H)

    # ---- expand probs to the (h, g, d) lanes, weight V, fused sum-over-g + O-proj ----
    p_exp = jnp.dot(probs, expP_ref[...], preferred_element_type=jnp.float32)   # (N, 128)
    out_ref[...] = jnp.dot(p_exp * ve, wo_ref[...],
                           preferred_element_type=jnp.float32)                  # (N, 128)


# ------------------------------ JAX wrapper -----------------------------------
def mlha_attention(x, params):
    B, S, hid = x.shape
    N = B * S
    xf = x.reshape(N, hid)

    def full(a):
        nd = a.ndim
        return pl.BlockSpec(a.shape, lambda i, _nd=nd: (0,) * _nd)

    out = pl.pallas_call(
        mlha_kernel,
        out_shape=jax.ShapeDtypeStruct((N, OUT_PAD), jnp.float32),
        grid=(1,),
        in_specs=[full(xf), full(params["gamma"]), full(params["beta"]),
                  full(params["w_all"]), full(params["cosT"]), full(params["sinT"]),
                  full(params["seg"]), full(params["grp"]), full(params["grpT"]),
                  full(params["expP"]), full(params["wo_fold"])],
        out_specs=pl.BlockSpec((N, OUT_PAD), lambda i: (0, 0)),
        compiler_params=pltpu.CompilerParams(dimension_semantics=("arbitrary",)),
    )(xf, params["gamma"], params["beta"], params["w_all"], params["cosT"],
      params["sinT"], params["seg"], params["grp"], params["grpT"],
      params["expP"], params["wo_fold"])
    return out[:, :hid].reshape(B, S, hid)


# ------------------------- parameter / table setup ----------------------------
def rotate_half_weight(w):
    """w: (H*D, hidden) torch-layout Linear weight.  Returns W' s.t.
    h @ W'^T == rotate_half(h @ W^T) applied per head on the last dim."""
    D = HEAD_DIM
    j = np.arange(D)
    src = np.where(j < D // 2, 2 * j + 1, 2 * (j - D // 2))
    sgn = np.where(j < D // 2, -1.0, 1.0).astype(np.float32)
    w3 = w.reshape(NUM_HEADS, D, HIDDEN)
    wr = w3[:, src, :] * sgn[None, :, None]
    return wr.reshape(NUM_HEADS * D, HIDDEN)


def make_params_and_tables(key):
    ks = jax.random.split(key, 4)
    HD = NUM_HEADS * HEAD_DIM
    wq = jax.random.normal(ks[0], (HD, HIDDEN), jnp.float32) * 0.1   # torch (out, in)
    wk = jax.random.normal(ks[1], (HD, HIDDEN), jnp.float32) * 0.1
    wv = jax.random.normal(ks[2], (HD, HIDDEN), jnp.float32) * 0.1
    wo = jax.random.normal(ks[3], (HIDDEN, HD), jnp.float32) * 0.1
    gamma = jnp.ones((1, HIDDEN), jnp.float32)                        # LayerNorm defaults
    beta = jnp.zeros((1, HIDDEN), jnp.float32)

    wq_np, wk_np, wv_np, wo_np = (np.asarray(w) for w in (wq, wk, wv, wo))
    scale = np.float32(1.0 / math.sqrt(HEAD_DIM))

    wqT = wq_np.T * scale                         # (hidden, HD), 1/sqrt(D) folded in
    wqrT = rotate_half_weight(wq_np).T * scale
    wkT = wk_np.T
    wkrT = rotate_half_weight(wk_np).T
    wvT = wv_np.T
    woT = wo_np.T                                  # (HD, hidden)

    # expanded (h, g, d) lane layout: column c = h*H*D + g*D + d
    c = np.arange(EXP)
    h_idx = c // (NUM_HEADS * HEAD_DIM)
    g_idx = (c // HEAD_DIM) % NUM_HEADS
    d_idx = c % HEAD_DIM
    q_src = h_idx * HEAD_DIM + d_idx               # q element feeding column c
    k_src = g_idx * HEAD_DIM + d_idx               # k / v element feeding column c

    w_main = np.concatenate([wqT[:, q_src], wkT[:, k_src], wvT[:, k_src]], axis=1)  # (32,384)
    w_rot = np.concatenate([wqrT[:, q_src], wkrT[:, k_src],
                            np.zeros((HIDDEN, EXP), np.float32)], axis=1)
    w_all = np.concatenate([w_main, w_rot], axis=1).astype(np.float32)              # (32,768)

    # 0/1 matrices for batched segment reductions / expansions
    pair = h_idx * NUM_HEADS + g_idx
    seg = (pair[:, None] == np.arange(NUM_HEADS * NUM_HEADS)[None, :]).astype(np.float32)  # (128,16)
    grp = ((np.arange(NUM_HEADS * NUM_HEADS) // NUM_HEADS)[:, None]
           == np.arange(NUM_HEADS)[None, :]).astype(np.float32)                            # (16,4)
    grpT = np.ascontiguousarray(grp.T)                                                     # (4,16)
    expP = np.ascontiguousarray(seg.T)                                                     # (16,128)

    # output projection with the sum-over-g fold, padded to a lane-dense 128 columns
    wo_fold = woT[q_src, :]                                                                # (128,32)
    wo_fold = np.concatenate(
        [wo_fold, np.zeros((EXP, OUT_PAD - HIDDEN), np.float32)], axis=1).astype(np.float32)

    # rotary sin/cos tables; position_ids default to arange(S); freq index == head index
    inv_freq = 1.0 / (ROPE_BASE ** (np.arange(0, HEAD_DIM, 2, dtype=np.float32) / HEAD_DIM))
    pos = np.arange(SEQ, dtype=np.float32)
    ang = pos[:, None] * inv_freq[None, :]          # (S, D/2) == (S, H)
    sin_sh, cos_sh = np.sin(ang), np.cos(ang)
    tok_pos = np.tile(np.arange(SEQ), BATCH)        # token n = b*S + s  ->  s
    cos_tok, sin_tok = cos_sh[tok_pos], sin_sh[tok_pos]            # (N, H)
    ones = np.ones((N_TOKENS, EXP), np.float32)
    zeros = np.zeros((N_TOKENS, EXP), np.float32)
    cosT = np.concatenate([cos_tok[:, h_idx], cos_tok[:, g_idx], ones], axis=1).astype(np.float32)
    sinT = np.concatenate([sin_tok[:, h_idx], sin_tok[:, g_idx], zeros], axis=1).astype(np.float32)

    params = dict(
        gamma=gamma, beta=beta,
        w_all=jnp.asarray(w_all), wo_fold=jnp.asarray(wo_fold),
        seg=jnp.asarray(seg), grp=jnp.asarray(grp), grpT=jnp.asarray(grpT),
        expP=jnp.asarray(expP),
        cosT=jnp.asarray(cosT), sinT=jnp.asarray(sinT),
        # raw torch-layout weights kept for the reference implementation
        wq=wq, wk=wk, wv=wv, wo=wo,
    )
    return params, jnp.asarray(sin_sh), jnp.asarray(cos_sh)


# ------------------------- plain-JAX reference (torch semantics) --------------
def reference(x, params, sin_sh, cos_sh):
    B, S, hid = x.shape
    H, D = NUM_HEADS, HEAD_DIM
    mu = x.mean(-1, keepdims=True)
    var = ((x - mu) ** 2).mean(-1, keepdims=True)
    h = (x - mu) / jnp.sqrt(var + LN_EPS) * params["gamma"].reshape(-1) + params["beta"].reshape(-1)
    q = (h @ params["wq"].T).reshape(B, S, H, D)
    k = (h @ params["wk"].T).reshape(B, S, H, D)
    v = (h @ params["wv"].T).reshape(B, S, H, D)
    sin = sin_sh[None, :, :, None]          # (1, S, D/2, 1), broadcasts since H == D/2
    cos = cos_sh[None, :, :, None]

    def rot_half(t):
        x1, x2 = t[..., 0::2], t[..., 1::2]
        return jnp.concatenate([-x2, x1], axis=-1)

    q = q * cos + rot_half(q) * sin
    k = k * cos + rot_half(k) * sin
    # NOTE: num_kv_heads == num_heads here, so the repeat_interleave branch is a no-op.
    scale = 1.0 / math.sqrt(D)
    scores = jnp.einsum("bshd,bsgd->bshg", q, k) * scale      # attention across heads
    probs = jax.nn.softmax(scores.astype(jnp.float32), axis=-1)
    out = jnp.einsum("bshg,bsgd->bshd", probs, v).reshape(B, S, H * D)
    return out @ params["wo"].T


# ----------------------------------- main --------------------------------------
if __name__ == "__main__":
    key = jax.random.PRNGKey(0)
    pkey, xkey = jax.random.split(key)
    params, sin_sh, cos_sh = make_params_and_tables(pkey)
    x = jax.random.normal(xkey, (BATCH, SEQ, HIDDEN), jnp.float32)

    y = jax.block_until_ready(mlha_attention(x, params))
    y_ref = jax.block_until_ready(reference(x, params, sin_sh, cos_sh))

    max_err = float(jnp.max(jnp.abs(y - y_ref)))
    assert y.shape == (BATCH, SEQ, HIDDEN)
    assert max_err < 2e-2, f"mismatch vs reference: {max_err}"

    print("KERNEL_OK")
</pallas_src>

<mosaic_0001>
module attributes {stable_mosaic.version = 11 : i64} {
  func.func @mlha_kernel(%arg0: i32, %arg1: memref<16x32xf32, #tpu.memory_space<vmem>>, %arg2: memref<1x32xf32, #tpu.memory_space<vmem>>, %arg3: memref<1x32xf32, #tpu.memory_space<vmem>>, %arg4: memref<32x768xf32, #tpu.memory_space<vmem>>, %arg5: memref<16x384xf32, #tpu.memory_space<vmem>>, %arg6: memref<16x384xf32, #tpu.memory_space<vmem>>, %arg7: memref<128x16xf32, #tpu.memory_space<vmem>>, %arg8: memref<16x4xf32, #tpu.memory_space<vmem>>, %arg9: memref<4x16xf32, #tpu.memory_space<vmem>>, %arg10: memref<16x128xf32, #tpu.memory_space<vmem>>, %arg11: memref<128x128xf32, #tpu.memory_space<vmem>>, %arg12: memref<16x128xf32, #tpu.memory_space<vmem>>) attributes {dimension_semantics = [#tpu.dimension_semantics<arbitrary>], iteration_bounds = array<i64: 1>, scalar_prefetch = 0 : i64, scratch_operands = 0 : i64, tpu.core_type = #tpu.core_type<tc>, window_params = [{pipeline_mode = #tpu.pipeline_mode<synchronous>, transform_indices = @transform_0, window_bounds = array<i64: 16, 32>}, {pipeline_mode = #tpu.pipeline_mode<synchronous>, transform_indices = @transform_1, window_bounds = array<i64: 1, 32>}, {pipeline_mode = #tpu.pipeline_mode<synchronous>, transform_indices = @transform_2, window_bounds = array<i64: 1, 32>}, {pipeline_mode = #tpu.pipeline_mode<synchronous>, transform_indices = @transform_3, window_bounds = array<i64: 32, 768>}, {pipeline_mode = #tpu.pipeline_mode<synchronous>, transform_indices = @transform_4, window_bounds = array<i64: 16, 384>}, {pipeline_mode = #tpu.pipeline_mode<synchronous>, transform_indices = @transform_5, window_bounds = array<i64: 16, 384>}, {pipeline_mode = #tpu.pipeline_mode<synchronous>, transform_indices = @transform_6, window_bounds = array<i64: 128, 16>}, {pipeline_mode = #tpu.pipeline_mode<synchronous>, transform_indices = @transform_7, window_bounds = array<i64: 16, 4>}, {pipeline_mode = #tpu.pipeline_mode<synchronous>, transform_indices = @transform_8, window_bounds = array<i64: 4, 16>}, {pipeline_mode = #tpu.pipeline_mode<synchronous>, transform_indices = @transform_9, window_bounds = array<i64: 16, 128>}, {pipeline_mode = #tpu.pipeline_mode<synchronous>, transform_indices = @transform_10, window_bounds = array<i64: 128, 128>}, {pipeline_mode = #tpu.pipeline_mode<synchronous>, transform_indices = @transform_11, window_bounds = array<i64: 16, 128>}]} {
    %c0 = arith.constant 0 : index
    %c0_0 = arith.constant 0 : index
    %0 = vector.load %arg1[%c0, %c0_0] : memref<16x32xf32, #tpu.memory_space<vmem>>, vector<16x32xf32>
    %cst = arith.constant dense<0.000000e+00> : vector<16xf32>
    %1 = vector.multi_reduction <add>, %0, %cst [1] : vector<16x32xf32> to vector<16xf32>
    %2 = vector.shape_cast %1 : vector<16xf32> to vector<16x1xf32>
    %cst_1 = arith.constant 3.200000e+01 : f32
    %3 = vector.broadcast %cst_1 : f32 to vector<16x1xf32>
    %4 = arith.divf %2, %3 : vector<16x1xf32>
    %5 = vector.broadcast %4 : vector<16x1xf32> to vector<16x32xf32>
    %6 = arith.subf %0, %5 : vector<16x32xf32>
    %7 = arith.mulf %6, %6 : vector<16x32xf32>
    %cst_2 = arith.constant dense<0.000000e+00> : vector<16xf32>
    %8 = vector.multi_reduction <add>, %7, %cst_2 [1] : vector<16x32xf32> to vector<16xf32>
    %9 = vector.shape_cast %8 : vector<16xf32> to vector<16x1xf32>
    %cst_3 = arith.constant 3.200000e+01 : f32
    %10 = vector.broadcast %cst_3 : f32 to vector<16x1xf32>
    %11 = arith.divf %9, %10 : vector<16x1xf32>
    %cst_4 = arith.constant 9.99999974E-6 : f32
    %12 = vector.broadcast %cst_4 : f32 to vector<16x1xf32>
    %13 = arith.addf %11, %12 : vector<16x1xf32>
    %14 = math.rsqrt %13 : vector<16x1xf32>
    %15 = vector.broadcast %14 : vector<16x1xf32> to vector<16x32xf32>
    %16 = arith.mulf %6, %15 : vector<16x32xf32>
    %c0_5 = arith.constant 0 : index
    %c0_6 = arith.constant 0 : index
    %17 = vector.load %arg2[%c0_5, %c0_6] : memref<1x32xf32, #tpu.memory_space<vmem>>, vector<1x32xf32>
    %18 = vector.broadcast %17 : vector<1x32xf32> to vector<16x32xf32>
    %19 = arith.mulf %16, %18 : vector<16x32xf32>
    %c0_7 = arith.constant 0 : index
    %c0_8 = arith.constant 0 : index
    %20 = vector.load %arg3[%c0_7, %c0_8] : memref<1x32xf32, #tpu.memory_space<vmem>>, vector<1x32xf32>
    %21 = vector.broadcast %20 : vector<1x32xf32> to vector<16x32xf32>
    %22 = arith.addf %19, %21 : vector<16x32xf32>
    %c0_9 = arith.constant 0 : index
    %c0_10 = arith.constant 0 : index
    %23 = vector.load %arg4[%c0_9, %c0_10] : memref<32x768xf32, #tpu.memory_space<vmem>>, vector<32x768xf32>
    %cst_11 = arith.constant dense<0.000000e+00> : vector<16x768xf32>
    %24 = tpu.matmul %22, %23, %cst_11 {dimension_numbers = #tpu.dot_dimension_numbers<[1], [0], [0], [1], [0, 0, 1, 1], [], []>} : vector<16x32xf32>, vector<32x768xf32>, vector<16x768xf32> -> vector<16x768xf32>
    %25 = vector.extract_strided_slice %24 {offsets = [0, 0], sizes = [16, 384], strides = [1, 1]} : vector<16x768xf32> to vector<16x384xf32>
    %26 = vector.extract_strided_slice %24 {offsets = [0, 384], sizes = [16, 384], strides = [1, 1]} : vector<16x768xf32> to vector<16x384xf32>
    %c0_12 = arith.constant 0 : index
    %c0_13 = arith.constant 0 : index
    %27 = vector.load %arg5[%c0_12, %c0_13] : memref<16x384xf32, #tpu.memory_space<vmem>>, vector<16x384xf32>
    %28 = arith.mulf %25, %27 : vector<16x384xf32>
    %c0_14 = arith.constant 0 : index
    %c0_15 = arith.constant 0 : index
    %29 = vector.load %arg6[%c0_14, %c0_15] : memref<16x384xf32, #tpu.memory_space<vmem>>, vector<16x384xf32>
    %30 = arith.mulf %26, %29 : vector<16x384xf32>
    %31 = arith.addf %28, %30 : vector<16x384xf32>
    %32 = vector.extract_strided_slice %31 {offsets = [0, 0], sizes = [16, 128], strides = [1, 1]} : vector<16x384xf32> to vector<16x128xf32>
    %33 = vector.extract_strided_slice %31 {offsets = [0, 128], sizes = [16, 128], strides = [1, 1]} : vector<16x384xf32> to vector<16x128xf32>
    %34 = vector.extract_strided_slice %31 {offsets = [0, 256], sizes = [16, 128], strides = [1, 1]} : vector<16x384xf32> to vector<16x128xf32>
    %35 = arith.mulf %32, %33 : vector<16x128xf32>
    %c0_16 = arith.constant 0 : index
    %c0_17 = arith.constant 0 : index
    %36 = vector.load %arg7[%c0_16, %c0_17] : memref<128x16xf32, #tpu.memory_space<vmem>>, vector<128x16xf32>
    %cst_18 = arith.constant dense<0.000000e+00> : vector<16x16xf32>
    %37 = tpu.matmul %35, %36, %cst_18 {dimension_numbers = #tpu.dot_dimension_numbers<[1], [0], [0], [1], [0, 0, 1, 1], [], []>} : vector<16x128xf32>, vector<128x16xf32>, vector<16x16xf32> -> vector<16x16xf32>
    %cst_19 = arith.constant dense<0xFF800000> : vector<16xf32>
    %38 = vector.multi_reduction <maximumf>, %37, %cst_19 [1] : vector<16x16xf32> to vector<16xf32>
    %39 = vector.shape_cast %38 : vector<16xf32> to vector<16x1xf32>
    %40 = vector.broadcast %39 : vector<16x1xf32> to vector<16x16xf32>
    %41 = arith.subf %37, %40 : vector<16x16xf32>
    %42 = math.exp %41 : vector<16x16xf32>
    %c0_20 = arith.constant 0 : index
    %c0_21 = arith.constant 0 : index
    %43 = vector.load %arg8[%c0_20, %c0_21] : memref<16x4xf32, #tpu.memory_space<vmem>>, vector<16x4xf32>
    %cst_22 = arith.constant dense<0.000000e+00> : vector<16x4xf32>
    %44 = tpu.matmul %42, %43, %cst_22 {dimension_numbers = #tpu.dot_dimension_numbers<[1], [0], [0], [1], [0, 0, 1, 1], [], []>} : vector<16x16xf32>, vector<16x4xf32>, vector<16x4xf32> -> vector<16x4xf32>
    %45 = tpu.reciprocal %44 {approx = true} : vector<16x4xf32> -> vector<16x4xf32>
    %c0_23 = arith.constant 0 : index
    %c0_24 = arith.constant 0 : index
    %46 = vector.load %arg9[%c0_23, %c0_24] : memref<4x16xf32, #tpu.memory_space<vmem>>, vector<4x16xf32>
    %cst_25 = arith.constant dense<0.000000e+00> : vector<16x16xf32>
    %47 = tpu.matmul %45, %46, %cst_25 {dimension_numbers = #tpu.dot_dimension_numbers<[1], [0], [0], [1], [0, 0, 1, 1], [], []>} : vector<16x4xf32>, vector<4x16xf32>, vector<16x16xf32> -> vector<16x16xf32>
    %48 = arith.mulf %42, %47 : vector<16x16xf32>
    %c0_26 = arith.constant 0 : index
    %c0_27 = arith.constant 0 : index
    %49 = vector.load %arg10[%c0_26, %c0_27] : memref<16x128xf32, #tpu.memory_space<vmem>>, vector<16x128xf32>
    %cst_28 = arith.constant dense<0.000000e+00> : vector<16x128xf32>
    %50 = tpu.matmul %48, %49, %cst_28 {dimension_numbers = #tpu.dot_dimension_numbers<[1], [0], [0], [1], [0, 0, 1, 1], [], []>} : vector<16x16xf32>, vector<16x128xf32>, vector<16x128xf32> -> vector<16x128xf32>
    %51 = arith.mulf %50, %34 : vector<16x128xf32>
    %c0_29 = arith.constant 0 : index
    %c0_30 = arith.constant 0 : index
    %52 = vector.load %arg11[%c0_29, %c0_30] : memref<128x128xf32, #tpu.memory_space<vmem>>, vector<128x128xf32>
    %cst_31 = arith.constant dense<0.000000e+00> : vector<16x128xf32>
    %53 = tpu.matmul %51, %52, %cst_31 {dimension_numbers = #tpu.dot_dimension_numbers<[1], [0], [0], [1], [0, 0, 1, 1], [], []>} : vector<16x128xf32>, vector<128x128xf32>, vector<16x128xf32> -> vector<16x128xf32>
    %c0_32 = arith.constant 0 : index
    %c0_33 = arith.constant 0 : index
    %54 = vector.load %arg12[%c0_32, %c0_33] : memref<16x128xf32, #tpu.memory_space<vmem>>, vector<16x128xf32>
    tpu.vector_store %arg12[%c0_32, %c0_33], %53 {strides = array<i32>} : memref<16x128xf32, #tpu.memory_space<vmem>>, vector<16x128xf32>,
    return
  }
  func.func @transform_0(%arg0: i32) -> (i32, i32) {
    %c0_i32 = arith.constant 0 : i32
    %c0_i32_0 = arith.constant 0 : i32
    %c0_i32_1 = arith.constant 0 : i32
    return %c0_i32, %c0_i32_0 : i32, i32
  }
  func.func @transform_1(%arg0: i32) -> (i32, i32) {
    %c0_i32 = arith.constant 0 : i32
    %c0_i32_0 = arith.constant 0 : i32
    %c0_i32_1 = arith.constant 0 : i32
    return %c0_i32, %c0_i32_0 : i32, i32
  }
  func.func @transform_2(%arg0: i32) -> (i32, i32) {
    %c0_i32 = arith.constant 0 : i32
    %c0_i32_0 = arith.constant 0 : i32
    %c0_i32_1 = arith.constant 0 : i32
    return %c0_i32, %c0_i32_0 : i32, i32
  }
  func.func @transform_3(%arg0: i32) -> (i32, i32) {
    %c0_i32 = arith.constant 0 : i32
    %c0_i32_0 = arith.constant 0 : i32
    %c0_i32_1 = arith.constant 0 : i32
    return %c0_i32, %c0_i32_0 : i32, i32
  }
  func.func @transform_4(%arg0: i32) -> (i32, i32) {
    %c0_i32 = arith.constant 0 : i32
    %c0_i32_0 = arith.constant 0 : i32
    %c0_i32_1 = arith.constant 0 : i32
    return %c0_i32, %c0_i32_0 : i32, i32
  }
  func.func @transform_5(%arg0: i32) -> (i32, i32) {
    %c0_i32 = arith.constant 0 : i32
    %c0_i32_0 = arith.constant 0 : i32
    %c0_i32_1 = arith.constant 0 : i32
    return %c0_i32, %c0_i32_0 : i32, i32
  }
  func.func @transform_6(%arg0: i32) -> (i32, i32) {
    %c0_i32 = arith.constant 0 : i32
    %c0_i32_0 = arith.constant 0 : i32
    %c0_i32_1 = arith.constant 0 : i32
    return %c0_i32, %c0_i32_0 : i32, i32
  }
  func.func @transform_7(%arg0: i32) -> (i32, i32) {
    %c0_i32 = arith.constant 0 : i32
    %c0_i32_0 = arith.constant 0 : i32
    %c0_i32_1 = arith.constant 0 : i32
    return %c0_i32, %c0_i32_0 : i32, i32
  }
  func.func @transform_8(%arg0: i32) -> (i32, i32) {
    %c0_i32 = arith.constant 0 : i32
    %c0_i32_0 = arith.constant 0 : i32
    %c0_i32_1 = arith.constant 0 : i32
    return %c0_i32, %c0_i32_0 : i32, i32
  }
  func.func @transform_9(%arg0: i32) -> (i32, i32) {
    %c0_i32 = arith.constant 0 : i32
    %c0_i32_0 = arith.constant 0 : i32
    %c0_i32_1 = arith.constant 0 : i32
    return %c0_i32, %c0_i32_0 : i32, i32
  }
  func.func @transform_10(%arg0: i32) -> (i32, i32) {
    %c0_i32 = arith.constant 0 : i32
    %c0_i32_0 = arith.constant 0 : i32
    %c0_i32_1 = arith.constant 0 : i32
    return %c0_i32, %c0_i32_0 : i32, i32
  }
  func.func @transform_11(%arg0: i32) -> (i32, i32) {
    %c0_i32 = arith.constant 0 : i32
    %c0_i32_0 = arith.constant 0 : i32
    %c0_i32_1 = arith.constant 0 : i32
    return %c0_i32, %c0_i32_0 : i32, i32
  }
}

</mosaic_0001>

<llo_original>
// kernel: tpu_custom_call.1
$region0: #{tpu_custom_call.1}
  #allocation0 [shape = 'u32[]', space=smem, size = 0x4, offset = 0x4, fixed_abs, tag = 'smem constant byte address 0x4 - core index']
  #allocation1 [shape = 'u32[144,128]{1,0:T(1,128)}', space=vmem, size = 0x12000, scoped, tag = 'internal scratch']
  %s0 = inlined_call_operand.vmem [shape: f32[16,32], index: 0, kind: input, shape index: {}]
  %s1 = inlined_call_operand.vmem [shape: f32[1,32], index: 1, kind: input, shape index: {}]
  %s2 = inlined_call_operand.vmem [shape: f32[1,32], index: 2, kind: input, shape index: {}]
  %s3 = inlined_call_operand.hbm [shape: f32[32,768], index: 3, kind: input, shape index: {}]
  %s4 = inlined_call_operand.vmem [shape: f32[16,384], index: 4, kind: input, shape index: {}]
  %s5 = inlined_call_operand.hbm [shape: f32[16,384], index: 5, kind: input, shape index: {}]
  %s6 = inlined_call_operand.vmem [shape: f32[128,16], index: 6, kind: input, shape index: {}]
  %s7 = inlined_call_operand.vmem [shape: f32[16,4], index: 7, kind: input, shape index: {}]
  %s8 = inlined_call_operand.vmem [shape: f32[4,16], index: 8, kind: input, shape index: {}]
  %s9 = inlined_call_operand.hbm [shape: f32[16,128], index: 9, kind: input, shape index: {}]
  %s10 = inlined_call_operand.vmem [shape: f32[128,128], index: 10, kind: input, shape index: {}]
  %s11 = inlined_call_operand.hbm [shape: f32[16,128], index: 11, kind: output, shape index: {}]
  %s12 = sld [smem:[#allocation0]]
  $region66: #{tpu_custom_call.1} parent=0
    _
  %s14 = ssub.s32 1, %s12
  %s15 = scalar_select 0, %s14, %s12
  $region1: #{tpu_custom_call.1} parent=0
    #allocation2 [shape = 'u8[98304]{0}', space=vmem, size = 0x18000, scoped, tag = 'input window, operand 3, single buffered']
    #allocation3 [shape = 's32[1]{0}', space=sflag, size = 0x4, scoped, tag = 'scoped memory for tpu_custom_call.1']
    #allocation4 [shape = 's32[1]{0}', space=sflag, size = 0x4, scoped, tag = 'scoped memory for tpu_custom_call.1']
    #allocation5 [shape = 'u8[24576]{0}', space=vmem, size = 0x6000, scoped, tag = 'input window, operand 5, single buffered']
    #allocation6 [shape = 's32[1]{0}', space=sflag, size = 0x4, scoped, tag = 'scoped memory for tpu_custom_call.1']
    #allocation7 [shape = 'u8[8192]{0}', space=vmem, size = 0x2000, scoped, tag = 'input window, operand 9, single buffered']
    #allocation8 [shape = 'u8[8192]{0}', space=vmem, size = 0x2000, scoped, tag = 'output window, operand 0, single buffered']
    %16 = vsyncpa [#allocation3], 0
    %17 = vsyncpa [#allocation6], 0
    %18 = vsyncpa [#allocation4], 0
    // Predicated region
    $region2: #{tpu_custom_call.1} parent=1 // pred_check
      _
    $region3: #{tpu_custom_call.1} parent=1 // pred_check_branch
      %20 = sbr.rel (0) target = $region5
    $region4: #{tpu_custom_call.1} parent=1 // pred_region
      _
    $region5: #{tpu_custom_call.1} parent=1 // pred_fallthru
      _
    // Predicated region
    $region6: #{tpu_custom_call.1} parent=1 // pred_check
      _
    $region7: #{tpu_custom_call.1} parent=1 // pred_check_branch
      %22 = sbr.rel (0) target = $region9
    $region8: #{tpu_custom_call.1} parent=1 // pred_region
      _
    $region9: #{tpu_custom_call.1} parent=1 // pred_fallthru
      _
    // Predicated region
    $region10: #{tpu_custom_call.1} parent=1 // pred_check
      _
    $region11: #{tpu_custom_call.1} parent=1 // pred_check_branch
      %24 = sbr.rel (0) target = $region13
    $region12: #{tpu_custom_call.1} parent=1 // pred_region
      _
    $region13: #{tpu_custom_call.1} parent=1 // pred_fallthru
      _
    // Predicated region
    $region14: #{tpu_custom_call.1} parent=1 // pred_check
      _
    $region15: #{tpu_custom_call.1} parent=1 // pred_check_branch
      %26 = sbr.rel (0) target = $region17
    $region16: #{tpu_custom_call.1} parent=1 // pred_region
      %s28 = ssub.s32 3072, 3072
      %29 = vsyncadd [#allocation3], %s28
      %s30 = sshll.u32 [#allocation2], 4
      %s31 = int_to_ptr.vmem [resolvable:$true] %s30
      %36 = dma.hbm_to_vmem [thread:$0]  %s3, 3072, %s31, [#allocation3], 768, 768, 48
    $region17: #{tpu_custom_call.1} parent=1 // pred_fallthru
      _
    // Predicated region
    $region18: #{tpu_custom_call.1} parent=1 // pred_check
      _
    $region19: #{tpu_custom_call.1} parent=1 // pred_check_branch
      %38 = sbr.rel (0) target = $region21
    $region20: #{tpu_custom_call.1} parent=1 // pred_region
      _
    $region21: #{tpu_custom_call.1} parent=1 // pred_fallthru
      _
    // Predicated region
    $region22: #{tpu_custom_call.1} parent=1 // pred_check
      _
    $region23: #{tpu_custom_call.1} parent=1 // pred_check_branch
      %40 = sbr.rel (0) target = $region25
    $region24: #{tpu_custom_call.1} parent=1 // pred_region
      %s42 = ssub.s32 768, 768
      %43 = vsyncadd [#allocation6], %s42
      %s44 = sshll.u32 [#allocation5], 4
      %s45 = int_to_ptr.vmem [resolvable:$true] %s44
      %50 = dma.hbm_to_vmem [thread:$0]  %s5, 768, %s45, [#allocation6], 384, 384, 24
    $region25: #{tpu_custom_call.1} parent=1 // pred_fallthru
      _
    // Predicated region
    $region26: #{tpu_custom_call.1} parent=1 // pred_check
      _
    $region27: #{tpu_custom_call.1} parent=1 // pred_check_branch
      %52 = sbr.rel (0) target = $region29
    $region28: #{tpu_custom_call.1} parent=1 // pred_region
      _
    $region29: #{tpu_custom_call.1} parent=1 // pred_fallthru
      _
    // Predicated region
    $region30: #{tpu_custom_call.1} parent=1 // pred_check
      _
    $region31: #{tpu_custom_call.1} parent=1 // pred_check_branch
      %54 = sbr.rel (0) target = $region33
    $region32: #{tpu_custom_call.1} parent=1 // pred_region
      _
    $region33: #{tpu_custom_call.1} parent=1 // pred_fallthru
      _
    // Predicated region
    $region34: #{tpu_custom_call.1} parent=1 // pred_check
      _
    $region35: #{tpu_custom_call.1} parent=1 // pred_check_branch
      %56 = sbr.rel (0) target = $region37
    $region36: #{tpu_custom_call.1} parent=1 // pred_region
      _
    $region37: #{tpu_custom_call.1} parent=1 // pred_fallthru
      _
    // Predicated region
    $region38: #{tpu_custom_call.1} parent=1 // pred_check
      _
    $region39: #{tpu_custom_call.1} parent=1 // pred_check_branch
      %58 = sbr.rel (0) target = $region41
    $region40: #{tpu_custom_call.1} parent=1 // pred_region
      %s60 = ssub.s32 256, 256
      %61 = vsyncadd [#allocation6], %s60
      %s62 = sshll.u32 [#allocation7], 4
      %s63 = int_to_ptr.vmem [resolvable:$true] %s62
      %68 = dma.hbm_to_vmem [thread:$0]  %s9, 256, %s63, [#allocation6], 128, 128, 8
    $region41: #{tpu_custom_call.1} parent=1 // pred_fallthru
      _
    // Predicated region
    $region42: #{tpu_custom_call.1} parent=1 // pred_check
      _
    $region43: #{tpu_custom_call.1} parent=1 // pred_check_branch
      %70 = sbr.rel (0) target = $region45
    $region44: #{tpu_custom_call.1} parent=1 // pred_region
      _
    $region45: #{tpu_custom_call.1} parent=1 // pred_fallthru
      _
    // Predicated region
    $region46: #{tpu_custom_call.1} parent=1 // pred_check
      _
    $region47: #{tpu_custom_call.1} parent=1 // pred_check_branch
      %72 = sbr.rel (0) target = $region49
    $region48: #{tpu_custom_call.1} parent=1 // pred_region
      %73 = dma.done [#allocation3], 3072
    $region49: #{tpu_custom_call.1} parent=1 // pred_fallthru
      _
    // Predicated region
    $region50: #{tpu_custom_call.1} parent=1 // pred_check
      _
    $region51: #{tpu_custom_call.1} parent=1 // pred_check_branch
      %75 = sbr.rel (0) target = $region53
    $region52: #{tpu_custom_call.1} parent=1 // pred_region
      %76 = dma.done [#allocation6], 768
    $region53: #{tpu_custom_call.1} parent=1 // pred_fallthru
      _
    // Predicated region
    $region54: #{tpu_custom_call.1} parent=1 // pred_check
      _
    $region55: #{tpu_custom_call.1} parent=1 // pred_check_branch
      %78 = sbr.rel (0) target = $region57
    $region56: #{tpu_custom_call.1} parent=1 // pred_region
      %79 = dma.done [#allocation6], 256
    $region57: #{tpu_custom_call.1} parent=1 // pred_fallthru
      _
    %v80 = vld [vmem:[%s0] sm:$0xff]
    %v81 = vld [vmem:[%s0 + $0x8] sm:$0xff]
    %vm82 = vcmask 261120
    %v83 = vsel %vm82, %v80, 0.0
    %84 = vadd.xlane.f32.xlu0 %v83
    %v85 = vpop.xlane.xlu0 %84
    %v86 = vsel %vm82, %v81, 0.0
    %87 = vadd.xlane.f32.xlu0 %v86
    %v88 = vpop.xlane.xlu0 %87
    %v89 = vrcp.pop 32.0
    %v90 = vmul.f32 %v85, %v89
    %v91 = vmul.f32 %v88, %v89
    %v92 = vsub.f32 %v80, %v90
    %v93 = vsub.f32 %v81, %v91
    %v94 = vmul.f32 %v92, %v92
    %v95 = vmul.f32 %v93, %v93
    %v96 = vsel %vm82, %v94, 0.0
    %97 = vadd.xlane.f32.xlu0 %v96
    %v98 = vpop.xlane.xlu0 %97
    %v99 = vsel %vm82, %v95, 0.0
    %100 = vadd.xlane.f32.xlu0 %v99
    %v101 = vpop.xlane.xlu0 %100
    %v102 = vmul.f32 %v98, %v89
    %v103 = vmul.f32 %v101, %v89
    %v104 = vadd.f32 %v102, 1e-05
    %v105 = vadd.f32 %v103, 1e-05
    %v106 = vrsqrt.pop %v104
    %v107 = vrsqrt.pop %v105
    %v108 = vmul.f32 %v92, %v106
    %v109 = vmul.f32 %v93, %v107
    %v110 = vld [vmem:[%s1] sm:$0x1]
    %v112 = vlaneseq
    %v113 = vshrl.u32 %v112, 7
    %v114 = vsub.s32 0, %v113
    %v115 = vrot.slane %v110, %v114
    %v117 = vmul.f32 %v108, %v115
    %v118 = vmul.f32 %v109, %v115
    %v119 = vld [vmem:[%s2] sm:$0x1]
    %v121 = vlaneseq
    %v122 = vshrl.u32 %v121, 7
    %v123 = vsub.s32 0, %v122
    %v124 = vrot.slane %v119, %v123
    %v126 = vadd.f32 %v117, %v124
    %v127 = vadd.f32 %v118, %v124
    %v128 = vld [vmem:[#allocation2] sm:$0xff]
    %v129 = vld [vmem:[#allocation2 + $0x8] sm:$0xff]
    %v130 = vld [vmem:[#allocation2 + $0x10] sm:$0xff]
    %v131 = vld [vmem:[#allocation2 + $0x18] sm:$0xff]
    %v132 = vld [vmem:[#allocation2 + $0x20] sm:$0xff]
    %v133 = vld [vmem:[#allocation2 + $0x28] sm:$0xff]
    %v134 = vld [vmem:[#allocation2 + $0x30] sm:$0xff]
    %v135 = vld [vmem:[#allocation2 + $0x38] sm:$0xff]
    %v136 = vld [vmem:[#allocation2 + $0x40] sm:$0xff]
    %v137 = vld [vmem:[#allocation2 + $0x48] sm:$0xff]
    %v138 = vld [vmem:[#allocation2 + $0x50] sm:$0xff]
    %v139 = vld [vmem:[#allocation2 + $0x58] sm:$0xff]
    %v140 = vld [vmem:[#allocation2 + $0x60] sm:$0xff]
    %v141 = vld [vmem:[#allocation2 + $0x68] sm:$0xff]
    %v142 = vld [vmem:[#allocation2 + $0x70] sm:$0xff]
    %v143 = vld [vmem:[#allocation2 + $0x78] sm:$0xff]
    %v144 = vld [vmem:[#allocation2 + $0x80] sm:$0xff]
    %v145 = vld [vmem:[#allocation2 + $0x88] sm:$0xff]
    %v146 = vld [vmem:[#allocation2 + $0x90] sm:$0xff]
    %v147 = vld [vmem:[#allocation2 + $0x98] sm:$0xff]
    %v148 = vld [vmem:[#allocation2 + $0xa0] sm:$0xff]
    %v149 = vld [vmem:[#allocation2 + $0xa8] sm:$0xff]
    %v150 = vld [vmem:[#allocation2 + $0xb0] sm:$0xff]
    %v151 = vld [vmem:[#allocation2 + $0xb8] sm:$0xff]
    %v153 = vsel %vm82, %v126, 0
    %v156 = vsel %vm82, %v127, 0
    %158 = vmatprep.subr.mxu0 %v129
    %159 = vmatpush1.msra.mxu0 %v128
    %160 = vmatprep.subr.mxu0 %v135
    %161 = vmatpush1.msra.mxu0 %v134
    %162 = vmatprep.subr.mxu0 %v141
    %163 = vmatpush1.msra.mxu0 %v140
    %164 = vmatprep.subr.mxu0 %v147
    %165 = vmatpush1.msra.mxu0 %v146
    %166 = vmatprep.subr.mxu0 0.0
    %167 = vmatpush1.msra.mxu0 0.0
    %168 = vmatprep.subr.mxu0 0.0
    %169 = vmatpush1.msra.mxu0 0.0
    %170 = vmatprep.subr.mxu0 0.0
    %171 = vmatpush1.msra.mxu0 0.0
    %172 = vmatprep.subr.mxu0 0.0
    %173 = vmatpush1.msra.mxu0 0.0
    %174 = vmatprep.subr.mxu0 0.0
    %175 = vmatpush1.msra.mxu0 0.0
    %176 = vmatprep.subr.mxu0 0.0
    %177 = vmatpush1.msra.mxu0 0.0
    %178 = vmatprep.subr.mxu0 0.0
    %179 = vmatpush1.msra.mxu0 0.0
    %180 = vmatprep.subr.mxu0 0.0
    %181 = vmatpush1.msra.mxu0 0.0
    %182 = vmatprep.subr.mxu0 0.0
    %183 = vmatpush1.msra.mxu0 0.0
    %184 = vmatprep.subr.mxu0 0.0
    %185 = vmatpush1.msra.mxu0 0.0
    %186 = vmatprep.subr.mxu0 0.0
    %187 = vmatpush1.msra.mxu0 0.0
    %188 = vmatprep.subr.mxu0 0.0
    %189 = vmatpush1.msra.mxu0 0.0
    %190 = vmatprep.subr.mxu0 0.0
    %191 = vmatpush1.msra.mxu0 0.0
    %192 = vmatprep.subr.mxu0 0.0
    %193 = vmatpush1.msra.mxu0 0.0
    %194 = vmatprep.subr.mxu0 0.0
    %195 = vmatpush1.msra.mxu0 0.0
    %196 = vmatprep.subr.mxu0 0.0
    %197 = vmatpush1.msra.mxu0 0.0
    %198 = vmatprep.subr.mxu0 0.0
    %199 = vmatpush1.msra.mxu0 0.0
    %200 = vmatprep.subr.mxu0 0.0
    %201 = vmatpush1.msra.mxu0 0.0
    %202 = vmatprep.subr.mxu0 0.0
    %203 = vmatpush1.msra.mxu0 0.0
    %204 = vmatprep.subr.mxu0 0.0
    %205 = vmatpush1.msra.mxu0 0.0
    %206 = vmatprep.subr.mxu0 0.0
    %207 = vmatpush1.msra.mxu0 0.0
    %208 = vmatprep.subr.mxu0 0.0
    %209 = vmatpush1.msra.mxu0 0.0
    %210 = vmatprep.subr.mxu0 0.0
    %211 = vmatpush1.msra.mxu0 0.0
    %212 = vmatprep.subr.mxu0 0.0
    %213 = vmatpush1.msra.mxu0 0.0
    %214 = vmatprep.subr.mxu0 0.0
    %215 = vmatpush1.msra.mxu0 0.0
    %216 = vmatprep.subr.mxu0 0.0
    %217 = vmatpush1.msra.mxu0 0.0
    %218 = vmatprep.subr.mxu0 0.0
    %219 = vmatpush1.msra.mxu0 0.0
    %220 = vmatprep.subr.mxu0 0.0
    %221 = vmatpush1.msra.mxu0 0.0
    %222 = vmatprep.mubr.f32.mxu0 0.0
    %223 = vmatmul.mubr.f32.gmra.mrb[0].mxu0 %v153
    %v224 = vpop.f32.mrb[0].mxu0
    %v225 = vadd.f32 0.0, %v224
    %v226 = vpop.f32.mrb[0].mxu0
    %v227 = vadd.f32 0.0, %v226
    %228 = vmatprep.mubr.f32.mxu0 0.0
    %229 = vmatmul.mubr.f32.gmra.mrb[0].mxu0 %v156
    %v230 = vpop.f32.mrb[0].mxu0
    %v231 = vadd.f32 0.0, %v230
    %v232 = vpop.f32.mrb[0].mxu0
    %v233 = vadd.f32 0.0, %v232
    %234 = vdwg.mxu0
    %235 = vmatprep.subr.mxu0 %v131
    %236 = vmatpush1.msra.mxu0 %v130
    %237 = vmatprep.subr.mxu0 %v137
    %238 = vmatpush1.msra.mxu0 %v136
    %239 = vmatprep.subr.mxu0 %v143
    %240 = vmatpush1.msra.mxu0 %v142
    %241 = vmatprep.subr.mxu0 %v149
    %242 = vmatpush1.msra.mxu0 %v148
    %243 = vmatprep.subr.mxu0 0.0
    %244 = vmatpush1.msra.mxu0 0.0
    %245 = vmatprep.subr.mxu0 0.0
    %246 = vmatpush1.msra.mxu0 0.0
    %247 = vmatprep.subr.mxu0 0.0
    %248 = vmatpush1.msra.mxu0 0.0
    %249 = vmatprep.subr.mxu0 0.0
    %250 = vmatpush1.msra.mxu0 0.0
    %251 = vmatprep.subr.mxu0 0.0
    %252 = vmatpush1.msra.mxu0 0.0
    %253 = vmatprep.subr.mxu0 0.0
    %254 = vmatpush1.msra.mxu0 0.0
    %255 = vmatprep.subr.mxu0 0.0
    %256 = vmatpush1.msra.mxu0 0.0
    %257 = vmatprep.subr.mxu0 0.0
    %258 = vmatpush1.msra.mxu0 0.0
    %259 = vmatprep.subr.mxu0 0.0
    %260 = vmatpush1.msra.mxu0 0.0
    %261 = vmatprep.subr.mxu0 0.0
    %262 = vmatpush1.msra.mxu0 0.0
    %263 = vmatprep.subr.mxu0 0.0
    %264 = vmatpush1.msra.mxu0 0.0
    %265 = vmatprep.subr.mxu0 0.0
    %266 = vmatpush1.msra.mxu0 0.0
    %267 = vmatprep.subr.mxu0 0.0
    %268 = vmatpush1.msra.mxu0 0.0
    %269 = vmatprep.subr.mxu0 0.0
    %270 = vmatpush1.msra.mxu0 0.0
    %271 = vmatprep.subr.mxu0 0.0
    %272 = vmatpush1.msra.mxu0 0.0
    %273 = vmatprep.subr.mxu0 0.0
    %274 = vmatpush1.msra.mxu0 0.0
    %275 = vmatprep.subr.mxu0 0.0
    %276 = vmatpush1.msra.mxu0 0.0
    %277 = vmatprep.subr.mxu0 0.0
    %278 = vmatpush1.msra.mxu0 0.0
    %279 = vmatprep.subr.mxu0 0.0
    %280 = vmatpush1.msra.mxu0 0.0
    %281 = vmatprep.subr.mxu0 0.0
    %282 = vmatpush1.msra.mxu0 0.0
    %283 = vmatprep.subr.mxu0 0.0
    %284 = vmatpush1.msra.mxu0 0.0
    %285 = vmatprep.subr.mxu0 0.0
    %286 = vmatpush1.msra.mxu0 0.0
    %287 = vmatprep.subr.mxu0 0.0
    %288 = vmatpush1.msra.mxu0 0.0
    %289 = vmatprep.subr.mxu0 0.0
    %290 = vmatpush1.msra.mxu0 0.0
    %291 = vmatprep.subr.mxu0 0.0
    %292 = vmatpush1.msra.mxu0 0.0
    %293 = vmatprep.subr.mxu0 0.0
    %294 = vmatpush1.msra.mxu0 0.0
    %295 = vmatprep.subr.mxu0 0.0
    %296 = vmatpush1.msra.mxu0 0.0
    %297 = vmatprep.subr.mxu0 0.0
    %298 = vmatpush1.msra.mxu0 0.0
    %299 = vmatprep.mubr.f32.mxu0 0.0
    %300 = vmatmul.mubr.f32.gmra.mrb[0].mxu0 %v153
    %v301 = vpop.f32.mrb[0].mxu0
    %v302 = vadd.f32 0.0, %v301
    %v303 = vpop.f32.mrb[0].mxu0
    %v304 = vadd.f32 0.0, %v303
    %305 = vmatprep.mubr.f32.mxu0 0.0
    %306 = vmatmul.mubr.f32.gmra.mrb[0].mxu0 %v156
    %v307 = vpop.f32.mrb[0].mxu0
    %v308 = vadd.f32 0.0, %v307
    %v309 = vpop.f32.mrb[0].mxu0
    %v310 = vadd.f32 0.0, %v309
    %311 = vdwg.mxu0
    %312 = vmatprep.subr.mxu0 %v133
    %313 = vmatpush1.msra.mxu0 %v132
    %314 = vmatprep.subr.mxu0 %v139
    %315 = vmatpush1.msra.mxu0 %v138
    %316 = vmatprep.subr.mxu0 %v145
    %317 = vmatpush1.msra.mxu0 %v144
    %318 = vmatprep.subr.mxu0 %v151
    %319 = vmatpush1.msra.mxu0 %v150
    %320 = vmatprep.subr.mxu0 0.0
    %321 = vmatpush1.msra.mxu0 0.0
    %322 = vmatprep.subr.mxu0 0.0
    %323 = vmatpush1.msra.mxu0 0.0
    %324 = vmatprep.subr.mxu0 0.0
    %325 = vmatpush1.msra.mxu0 0.0
    %326 = vmatprep.subr.mxu0 0.0
    %327 = vmatpush1.msra.mxu0 0.0
    %328 = vmatprep.subr.mxu0 0.0
    %329 = vmatpush1.msra.mxu0 0.0
    %330 = vmatprep.subr.mxu0 0.0
    %331 = vmatpush1.msra.mxu0 0.0
    %332 = vmatprep.subr.mxu0 0.0
    %333 = vmatpush1.msra.mxu0 0.0
    %334 = vmatprep.subr.mxu0 0.0
    %335 = vmatpush1.msra.mxu0 0.0
    %336 = vmatprep.subr.mxu0 0.0
    %337 = vmatpush1.msra.mxu0 0.0
    %338 = vmatprep.subr.mxu0 0.0
    %339 = vmatpush1.msra.mxu0 0.0
    %340 = vmatprep.subr.mxu0 0.0
    %341 = vmatpush1.msra.mxu0 0.0
    %342 = vmatprep.subr.mxu0 0.0
    %343 = vmatpush1.msra.mxu0 0.0
    %344 = vmatprep.subr.mxu0 0.0
    %345 = vmatpush1.msra.mxu0 0.0
    %346 = vmatprep.subr.mxu0 0.0
    %347 = vmatpush1.msra.mxu0 0.0
    %348 = vmatprep.subr.mxu0 0.0
    %349 = vmatpush1.msra.mxu0 0.0
    %350 = vmatprep.subr.mxu0 0.0
    %351 = vmatpush1.msra.mxu0 0.0
    %352 = vmatprep.subr.mxu0 0.0
    %353 = vmatpush1.msra.mxu0 0.0
    %354 = vmatprep.subr.mxu0 0.0
    %355 = vmatpush1.msra.mxu0 0.0
    %356 = vmatprep.subr.mxu0 0.0
    %357 = vmatpush1.msra.mxu0 0.0
    %358 = vmatprep.subr.mxu0 0.0
    %359 = vmatpush1.msra.mxu0 0.0
    %360 = vmatprep.subr.mxu0 0.0
    %361 = vmatpush1.msra.mxu0 0.0
    %362 = vmatprep.subr.mxu0 0.0
    %363 = vmatpush1.msra.mxu0 0.0
    %364 = vmatprep.subr.mxu0 0.0
    %365 = vmatpush1.msra.mxu0 0.0
    %366 = vmatprep.subr.mxu0 0.0
    %367 = vmatpush1.msra.mxu0 0.0
    %368 = vmatprep.subr.mxu0 0.0
    %369 = vmatpush1.msra.mxu0 0.0
    %370 = vmatprep.subr.mxu0 0.0
    %371 = vmatpush1.msra.mxu0 0.0
    %372 = vmatprep.subr.mxu0 0.0
    %373 = vmatpush1.msra.mxu0 0.0
    %374 = vmatprep.subr.mxu0 0.0
    %375 = vmatpush1.msra.mxu0 0.0
    %376 = vmatprep.mubr.f32.mxu0 0.0
    %377 = vmatmul.mubr.f32.gmra.mrb[0].mxu0 %v153
    %v378 = vpop.f32.mrb[0].mxu0
    %v379 = vadd.f32 0.0, %v378
    %v380 = vpop.f32.mrb[0].mxu0
    %v381 = vadd.f32 0.0, %v380
    %382 = vmatprep.mubr.f32.mxu0 0.0
    %383 = vmatmul.mubr.f32.gmra.mrb[0].mxu0 %v156
    %v384 = vpop.f32.mrb[0].mxu0
    %v385 = vadd.f32 0.0, %v384
    %v386 = vpop.f32.mrb[0].mxu0
    %v387 = vadd.f32 0.0, %v386
    %388 = vdwg.mxu0
    %v389 = vld [vmem:[%s4] sm:$0xff]
    %v390 = vld [vmem:[%s4 + $0x8] sm:$0xff]
    %v391 = vld [vmem:[%s4 + $0x10] sm:$0xff]
    %v392 = vld [vmem:[%s4 + $0x18] sm:$0xff]
    %v393 = vld [vmem:[%s4 + $0x20] sm:$0xff]
    %v394 = vld [vmem:[%s4 + $0x28] sm:$0xff]
    %v395 = vmul.f32 %v225, %v389
    %v396 = vmul.f32 %v227, %v390
    %v397 = vmul.f32 %v302, %v391
    %v398 = vmul.f32 %v231, %v392
    %v399 = vmul.f32 %v233, %v393
    %v400 = vmul.f32 %v308, %v394
    %v401 = vld [vmem:[#allocation5] sm:$0xff]
    %v402 = vld [vmem:[#allocation5 + $0x8] sm:$0xff]
    %v403 = vld [vmem:[#allocation5 + $0x10] sm:$0xff]
    %v404 = vld [vmem:[#allocation5 + $0x18] sm:$0xff]
    %v405 = vld [vmem:[#allocation5 + $0x20] sm:$0xff]
    %v406 = vld [vmem:[#allocation5 + $0x28] sm:$0xff]
    %v407 = vmul.f32 %v304, %v401
    %v408 = vmul.f32 %v379, %v402
    %v409 = vmul.f32 %v381, %v403
    %v410 = vmul.f32 %v310, %v404
    %v411 = vmul.f32 %v385, %v405
    %v412 = vmul.f32 %v387, %v406
    %v413 = vadd.f32 %v395, %v407
    %v414 = vadd.f32 %v396, %v408
    %v415 = vadd.f32 %v397, %v409
    %v416 = vadd.f32 %v398, %v410
    %v417 = vadd.f32 %v399, %v411
    %v418 = vadd.f32 %v400, %v412
    %v419 = vmul.f32 %v413, %v414
    %v420 = vmul.f32 %v416, %v417
    %v421 = vld [vmem:[%s6] sm:$0xff]
    %v422 = vld [vmem:[%s6 + $0x8] sm:$0xff]
    %v423 = vld [vmem:[%s6 + $0x10] sm:$0xff]
    %v424 = vld [vmem:[%s6 + $0x18] sm:$0xff]
    %v425 = vld [vmem:[%s6 + $0x20] sm:$0xff]
    %v426 = vld [vmem:[%s6 + $0x28] sm:$0xff]
    %v427 = vld [vmem:[%s6 + $0x30] sm:$0xff]
    %v428 = vld [vmem:[%s6 + $0x38] sm:$0xff]
    %v429 = vld [vmem:[%s6 + $0x40] sm:$0xff]
    %v430 = vld [vmem:[%s6 + $0x48] sm:$0xff]
    %v431 = vld [vmem:[%s6 + $0x50] sm:$0xff]
    %v432 = vld [vmem:[%s6 + $0x58] sm:$0xff]
    %v433 = vld [vmem:[%s6 + $0x60] sm:$0xff]
    %v434 = vld [vmem:[%s6 + $0x68] sm:$0xff]
    %v435 = vld [vmem:[%s6 + $0x70] sm:$0xff]
    %v436 = vld [vmem:[%s6 + $0x78] sm:$0xff]
    %437 = vmatprep.subr.mxu0 0.0
    %438 = vmatpush1.msra.mxu0 %v421
    %439 = vmatprep.subr.mxu0 0.0
    %440 = vmatpush1.msra.mxu0 %v422
    %441 = vmatprep.subr.mxu0 0.0
    %442 = vmatpush1.msra.mxu0 %v423
    %443 = vmatprep.subr.mxu0 0.0
    %444 = vmatpush1.msra.mxu0 %v424
    %445 = vmatprep.subr.mxu0 0.0
    %446 = vmatpush1.msra.mxu0 %v425
    %447 = vmatprep.subr.mxu0 0.0
    %448 = vmatpush1.msra.mxu0 %v426
    %449 = vmatprep.subr.mxu0 0.0
    %450 = vmatpush1.msra.mxu0 %v427
    %451 = vmatprep.subr.mxu0 0.0
    %452 = vmatpush1.msra.mxu0 %v428
    %453 = vmatprep.subr.mxu0 0.0
    %454 = vmatpush1.msra.mxu0 %v429
    %455 = vmatprep.subr.mxu0 0.0
    %456 = vmatpush1.msra.mxu0 %v430
    %457 = vmatprep.subr.mxu0 0.0
    %458 = vmatpush1.msra.mxu0 %v431
    %459 = vmatprep.subr.mxu0 0.0
    %460 = vmatpush1.msra.mxu0 %v432
    %461 = vmatprep.subr.mxu0 0.0
    %462 = vmatpush1.msra.mxu0 %v433
    %463 = vmatprep.subr.mxu0 0.0
    %464 = vmatpush1.msra.mxu0 %v434
    %465 = vmatprep.subr.mxu0 0.0
    %466 = vmatpush1.msra.mxu0 %v435
    %467 = vmatprep.subr.mxu0 0.0
    %468 = vmatpush1.msra.mxu0 %v436
    %469 = vmatprep.subr.mxu0 0.0
    %470 = vmatpush1.msra.mxu0 0.0
    %471 = vmatprep.subr.mxu0 0.0
    %472 = vmatpush1.msra.mxu0 0.0
    %473 = vmatprep.subr.mxu0 0.0
    %474 = vmatpush1.msra.mxu0 0.0
    %475 = vmatprep.subr.mxu0 0.0
    %476 = vmatpush1.msra.mxu0 0.0
    %477 = vmatprep.subr.mxu0 0.0
    %478 = vmatpush1.msra.mxu0 0.0
    %479 = vmatprep.subr.mxu0 0.0
    %480 = vmatpush1.msra.mxu0 0.0
    %481 = vmatprep.subr.mxu0 0.0
    %482 = vmatpush1.msra.mxu0 0.0
    %483 = vmatprep.subr.mxu0 0.0
    %484 = vmatpush1.msra.mxu0 0.0
    %485 = vmatprep.subr.mxu0 0.0
    %486 = vmatpush1.msra.mxu0 0.0
    %487 = vmatprep.subr.mxu0 0.0
    %488 = vmatpush1.msra.mxu0 0.0
    %489 = vmatprep.subr.mxu0 0.0
    %490 = vmatpush1.msra.mxu0 0.0
    %491 = vmatprep.subr.mxu0 0.0
    %492 = vmatpush1.msra.mxu0 0.0
    %493 = vmatprep.subr.mxu0 0.0
    %494 = vmatpush1.msra.mxu0 0.0
    %495 = vmatprep.subr.mxu0 0.0
    %496 = vmatpush1.msra.mxu0 0.0
    %497 = vmatprep.subr.mxu0 0.0
    %498 = vmatpush1.msra.mxu0 0.0
    %499 = vmatprep.subr.mxu0 0.0
    %500 = vmatpush1.msra.mxu0 0.0
    %501 = vmatprep.mubr.f32.mxu0 0.0
    %502 = vmatmul.mubr.f32.gmra.mrb[0].mxu0 %v419
    %v503 = vpop.f32.mrb[0].mxu0
    %v504 = vadd.f32 0.0, %v503
    %v505 = vpop.f32.mrb[0].mxu0
    %506 = vmatprep.mubr.f32.mxu0 0.0
    %507 = vmatmul.mubr.f32.gmra.mrb[0].mxu0 %v420
    %v508 = vpop.f32.mrb[0].mxu0
    %v509 = vadd.f32 0.0, %v508
    %v510 = vpop.f32.mrb[0].mxu0
    %511 = vdwg.mxu0
    %vm512 = vcmask 130048
    %v513 = vsel %vm512, %v504, -inf
    %514 = vmax.xlane.f32.xlu0 %v513
    %v515 = vpop.xlane.xlu0 %514
    %v516 = vsel %vm512, %v509, -inf
    %517 = vmax.xlane.f32.xlu0 %v516
    %v518 = vpop.xlane.xlu0 %517
    %v519 = vsub.f32 %v504, %v515
    %v520 = vsub.f32 %v509, %v518
    %v521 = vmul.f32 %v519, 1.442695
    %v522 = vpow.pop %v521
    %v523 = vmul.f32 %v520, 1.442695
    %v524 = vpow.pop %v523
    %v525 = vld [vmem:[%s7] sm:$0xff]
    %v526 = vld [vmem:[%s7 + $0x8] sm:$0xff]
    %v528 = vsel %vm512, %v522, 0
    %v531 = vsel %vm512, %v524, 0
    %533 = vmatprep.subr.mxu0 0.0
    %534 = vmatpush1.msra.mxu0 %v525
    %535 = vmatprep.subr.mxu0 0.0
    %536 = vmatpush1.msra.mxu0 %v526
    %537 = vmatprep.subr.mxu0 0.0
    %538 = vmatpush1.msra.mxu0 0.0
    %539 = vmatprep.subr.mxu0 0.0
    %540 = vmatpush1.msra.mxu0 0.0
    %541 = vmatprep.subr.mxu0 0.0
    %542 = vmatpush1.msra.mxu0 0.0
    %543 = vmatprep.subr.mxu0 0.0
    %544 = vmatpush1.msra.mxu0 0.0
    %545 = vmatprep.subr.mxu0 0.0
    %546 = vmatpush1.msra.mxu0 0.0
    %547 = vmatprep.subr.mxu0 0.0
    %548 = vmatpush1.msra.mxu0 0.0
    %549 = vmatprep.subr.mxu0 0.0
    %550 = vmatpush1.msra.mxu0 0.0
    %551 = vmatprep.subr.mxu0 0.0
    %552 = vmatpush1.msra.mxu0 0.0
    %553 = vmatprep.subr.mxu0 0.0
    %554 = vmatpush1.msra.mxu0 0.0
    %555 = vmatprep.subr.mxu0 0.0
    %556 = vmatpush1.msra.mxu0 0.0
    %557 = vmatprep.subr.mxu0 0.0
    %558 = vmatpush1.msra.mxu0 0.0
    %559 = vmatprep.subr.mxu0 0.0
    %560 = vmatpush1.msra.mxu0 0.0
    %561 = vmatprep.subr.mxu0 0.0
    %562 = vmatpush1.msra.mxu0 0.0
    %563 = vmatprep.subr.mxu0 0.0
    %564 = vmatpush1.msra.mxu0 0.0
    %565 = vmatprep.subr.mxu0 0.0
    %566 = vmatpush1.msra.mxu0 0.0
    %567 = vmatprep.subr.mxu0 0.0
    %568 = vmatpush1.msra.mxu0 0.0
    %569 = vmatprep.subr.mxu0 0.0
    %570 = vmatpush1.msra.mxu0 0.0
    %571 = vmatprep.subr.mxu0 0.0
    %572 = vmatpush1.msra.mxu0 0.0
    %573 = vmatprep.subr.mxu0 0.0
    %574 = vmatpush1.msra.mxu0 0.0
    %575 = vmatprep.subr.mxu0 0.0
    %576 = vmatpush1.msra.mxu0 0.0
    %577 = vmatprep.subr.mxu0 0.0
    %578 = vmatpush1.msra.mxu0 0.0
    %579 = vmatprep.subr.mxu0 0.0
    %580 = vmatpush1.msra.mxu0 0.0
    %581 = vmatprep.subr.mxu0 0.0
    %582 = vmatpush1.msra.mxu0 0.0
    %583 = vmatprep.subr.mxu0 0.0
    %584 = vmatpush1.msra.mxu0 0.0
    %585 = vmatprep.subr.mxu0 0.0
    %586 = vmatpush1.msra.mxu0 0.0
    %587 = vmatprep.subr.mxu0 0.0
    %588 = vmatpush1.msra.mxu0 0.0
    %589 = vmatprep.subr.mxu0 0.0
    %590 = vmatpush1.msra.mxu0 0.0
    %591 = vmatprep.subr.mxu0 0.0
    %592 = vmatpush1.msra.mxu0 0.0
    %593 = vmatprep.subr.mxu0 0.0
    %594 = vmatpush1.msra.mxu0 0.0
    %595 = vmatprep.subr.mxu0 0.0
    %596 = vmatpush1.msra.mxu0 0.0
    %597 = vmatprep.mubr.f32.mxu0 0.0
    %598 = vmatmul.mubr.f32.gmra.mrb[0].mxu0 %v528
    %v599 = vpop.f32.mrb[0].mxu0
    %v600 = vadd.f32 0.0, %v599
    %v601 = vpop.f32.mrb[0].mxu0
    %602 = vmatprep.mubr.f32.mxu0 0.0
    %603 = vmatmul.mubr.f32.gmra.mrb[0].mxu0 %v531
    %v604 = vpop.f32.mrb[0].mxu0
    %v605 = vadd.f32 0.0, %v604
    %v606 = vpop.f32.mrb[0].mxu0
    %607 = vdwg.mxu0
    %v608 = vrcp.pop %v600
    %v609 = vrcp.pop %v605
    %v610 = vld [vmem:[%s8] sm:$0xf]
    %vm611 = vcmask 31744
    %v613 = vsel %vm611, %v608, 0
    %v616 = vsel %vm611, %v609, 0
    %vm618 = vcmask 1043456
    %v620 = vsel %vm618, %v610, 0
    %622 = vmatprep.subr.mxu0 0.0
    %623 = vmatpush1.msra.mxu0 %v620
    %624 = vmatprep.subr.mxu0 0.0
    %625 = vmatpush1.msra.mxu0 0.0
    %626 = vmatprep.subr.mxu0 0.0
    %627 = vmatpush1.msra.mxu0 0.0
    %628 = vmatprep.subr.mxu0 0.0
    %629 = vmatpush1.msra.mxu0 0.0
    %630 = vmatprep.subr.mxu0 0.0
    %631 = vmatpush1.msra.mxu0 0.0
    %632 = vmatprep.subr.mxu0 0.0
    %633 = vmatpush1.msra.mxu0 0.0
    %634 = vmatprep.subr.mxu0 0.0
    %635 = vmatpush1.msra.mxu0 0.0
    %636 = vmatprep.subr.mxu0 0.0
    %637 = vmatpush1.msra.mxu0 0.0
    %638 = vmatprep.subr.mxu0 0.0
    %639 = vmatpush1.msra.mxu0 0.0
    %640 = vmatprep.subr.mxu0 0.0
    %641 = vmatpush1.msra.mxu0 0.0
    %642 = vmatprep.subr.mxu0 0.0
    %643 = vmatpush1.msra.mxu0 0.0
    %644 = vmatprep.subr.mxu0 0.0
    %645 = vmatpush1.msra.mxu0 0.0
    %646 = vmatprep.subr.mxu0 0.0
    %647 = vmatpush1.msra.mxu0 0.0
    %648 = vmatprep.subr.mxu0 0.0
    %649 = vmatpush1.msra.mxu0 0.0
    %650 = vmatprep.subr.mxu0 0.0
    %651 = vmatpush1.msra.mxu0 0.0
    %652 = vmatprep.subr.mxu0 0.0
    %653 = vmatpush1.msra.mxu0 0.0
    %654 = vmatprep.subr.mxu0 0.0
    %655 = vmatpush1.msra.mxu0 0.0
    %656 = vmatprep.subr.mxu0 0.0
    %657 = vmatpush1.msra.mxu0 0.0
    %658 = vmatprep.subr.mxu0 0.0
    %659 = vmatpush1.msra.mxu0 0.0
    %660 = vmatprep.subr.mxu0 0.0
    %661 = vmatpush1.msra.mxu0 0.0
    %662 = vmatprep.subr.mxu0 0.0
    %663 = vmatpush1.msra.mxu0 0.0
    %664 = vmatprep.subr.mxu0 0.0
    %665 = vmatpush1.msra.mxu0 0.0
    %666 = vmatprep.subr.mxu0 0.0
    %667 = vmatpush1.msra.mxu0 0.0
    %668 = vmatprep.subr.mxu0 0.0
    %669 = vmatpush1.msra.mxu0 0.0
    %670 = vmatprep.subr.mxu0 0.0
    %671 = vmatpush1.msra.mxu0 0.0
    %672 = vmatprep.subr.mxu0 0.0
    %673 = vmatpush1.msra.mxu0 0.0
    %674 = vmatprep.subr.mxu0 0.0
    %675 = vmatpush1.msra.mxu0 0.0
    %676 = vmatprep.subr.mxu0 0.0
    %677 = vmatpush1.msra.mxu0 0.0
    %678 = vmatprep.subr.mxu0 0.0
    %679 = vmatpush1.msra.mxu0 0.0
    %680 = vmatprep.subr.mxu0 0.0
    %681 = vmatpush1.msra.mxu0 0.0
    %682 = vmatprep.subr.mxu0 0.0
    %683 = vmatpush1.msra.mxu0 0.0
    %684 = vmatprep.subr.mxu0 0.0
    %685 = vmatpush1.msra.mxu0 0.0
    %686 = vmatprep.mubr.f32.mxu0 0.0
    %687 = vmatmul.mubr.f32.gmra.mrb[0].mxu0 %v613
    %v688 = vpop.f32.mrb[0].mxu0
    %v689 = vadd.f32 0.0, %v688
    %v690 = vpop.f32.mrb[0].mxu0
    %691 = vmatprep.mubr.f32.mxu0 0.0
    %692 = vmatmul.mubr.f32.gmra.mrb[0].mxu0 %v616
    %v693 = vpop.f32.mrb[0].mxu0
    %v694 = vadd.f32 0.0, %v693
    %v695 = vpop.f32.mrb[0].mxu0
    %696 = vdwg.mxu0
    %v697 = vmul.f32 %v522, %v689
    %v698 = vmul.f32 %v524, %v694
    %v699 = vld [vmem:[#allocation7] sm:$0xff]
    %v700 = vld [vmem:[#allocation7 + $0x8] sm:$0xff]
    %v702 = vsel %vm512, %v697, 0
    %v705 = vsel %vm512, %v698, 0
    %707 = vmatprep.subr.mxu0 0.0
    %708 = vmatpush1.msra.mxu0 %v699
    %709 = vmatprep.subr.mxu0 0.0
    %710 = vmatpush1.msra.mxu0 %v700
    %711 = vmatprep.subr.mxu0 0.0
    %712 = vmatpush1.msra.mxu0 0.0
    %713 = vmatprep.subr.mxu0 0.0
    %714 = vmatpush1.msra.mxu0 0.0
    %715 = vmatprep.subr.mxu0 0.0
    %716 = vmatpush1.msra.mxu0 0.0
    %717 = vmatprep.subr.mxu0 0.0
    %718 = vmatpush1.msra.mxu0 0.0
    %719 = vmatprep.subr.mxu0 0.0
    %720 = vmatpush1.msra.mxu0 0.0
    %721 = vmatprep.subr.mxu0 0.0
    %722 = vmatpush1.msra.mxu0 0.0
    %723 = vmatprep.subr.mxu0 0.0
    %724 = vmatpush1.msra.mxu0 0.0
    %725 = vmatprep.subr.mxu0 0.0
    %726 = vmatpush1.msra.mxu0 0.0
    %727 = vmatprep.subr.mxu0 0.0
    %728 = vmatpush1.msra.mxu0 0.0
    %729 = vmatprep.subr.mxu0 0.0
    %730 = vmatpush1.msra.mxu0 0.0
    %731 = vmatprep.subr.mxu0 0.0
    %732 = vmatpush1.msra.mxu0 0.0
    %733 = vmatprep.subr.mxu0 0.0
    %734 = vmatpush1.msra.mxu0 0.0
    %735 = vmatprep.subr.mxu0 0.0
    %736 = vmatpush1.msra.mxu0 0.0
    %737 = vmatprep.subr.mxu0 0.0
    %738 = vmatpush1.msra.mxu0 0.0
    %739 = vmatprep.subr.mxu0 0.0
    %740 = vmatpush1.msra.mxu0 0.0
    %741 = vmatprep.subr.mxu0 0.0
    %742 = vmatpush1.msra.mxu0 0.0
    %743 = vmatprep.subr.mxu0 0.0
    %744 = vmatpush1.msra.mxu0 0.0
    %745 = vmatprep.subr.mxu0 0.0
    %746 = vmatpush1.msra.mxu0 0.0
    %747 = vmatprep.subr.mxu0 0.0
    %748 = vmatpush1.msra.mxu0 0.0
    %749 = vmatprep.subr.mxu0 0.0
    %750 = vmatpush1.msra.mxu0 0.0
    %751 = vmatprep.subr.mxu0 0.0
    %752 = vmatpush1.msra.mxu0 0.0
    %753 = vmatprep.subr.mxu0 0.0
    %754 = vmatpush1.msra.mxu0 0.0
    %755 = vmatprep.subr.mxu0 0.0
    %756 = vmatpush1.msra.mxu0 0.0
    %757 = vmatprep.subr.mxu0 0.0
    %758 = vmatpush1.msra.mxu0 0.0
    %759 = vmatprep.subr.mxu0 0.0
    %760 = vmatpush1.msra.mxu0 0.0
    %761 = vmatprep.subr.mxu0 0.0
    %762 = vmatpush1.msra.mxu0 0.0
    %763 = vmatprep.subr.mxu0 0.0
    %764 = vmatpush1.msra.mxu0 0.0
    %765 = vmatprep.subr.mxu0 0.0
    %766 = vmatpush1.msra.mxu0 0.0
    %767 = vmatprep.subr.mxu0 0.0
    %768 = vmatpush1.msra.mxu0 0.0
    %769 = vmatprep.subr.mxu0 0.0
    %770 = vmatpush1.msra.mxu0 0.0
    %771 = vmatprep.mubr.f32.mxu0 0.0
    %772 = vmatmul.mubr.f32.gmra.mrb[0].mxu0 %v702
    %v773 = vpop.f32.mrb[0].mxu0
    %v774 = vadd.f32 0.0, %v773
    %v775 = vpop.f32.mrb[0].mxu0
    %776 = vmatprep.mubr.f32.mxu0 0.0
    %777 = vmatmul.mubr.f32.gmra.mrb[0].mxu0 %v705
    %v778 = vpop.f32.mrb[0].mxu0
    %v779 = vadd.f32 0.0, %v778
    %v780 = vpop.f32.mrb[0].mxu0
    %781 = vdwg.mxu0
    %v782 = vmul.f32 %v774, %v415
    %v783 = vmul.f32 %v779, %v418
    %v784 = vld [vmem:[%s10] sm:$0xff]
    %v785 = vld [vmem:[%s10 + $0x8] sm:$0xff]
    %v786 = vld [vmem:[%s10 + $0x10] sm:$0xff]
    %v787 = vld [vmem:[%s10 + $0x18] sm:$0xff]
    %v788 = vld [vmem:[%s10 + $0x20] sm:$0xff]
    %v789 = vld [vmem:[%s10 + $0x28] sm:$0xff]
    %v790 = vld [vmem:[%s10 + $0x30] sm:$0xff]
    %v791 = vld [vmem:[%s10 + $0x38] sm:$0xff]
    %v792 = vld [vmem:[%s10 + $0x40] sm:$0xff]
    %v793 = vld [vmem:[%s10 + $0x48] sm:$0xff]
    %v794 = vld [vmem:[%s10 + $0x50] sm:$0xff]
    %v795 = vld [vmem:[%s10 + $0x58] sm:$0xff]
    %v796 = vld [vmem:[%s10 + $0x60] sm:$0xff]
    %v797 = vld [vmem:[%s10 + $0x68] sm:$0xff]
    %v798 = vld [vmem:[%s10 + $0x70] sm:$0xff]
    %v799 = vld [vmem:[%s10 + $0x78] sm:$0xff]
    %800 = vmatprep.subr.mxu0 0.0
    %801 = vmatpush1.msra.mxu0 %v784
    %802 = vmatprep.subr.mxu0 0.0
    %803 = vmatpush1.msra.mxu0 %v785
    %804 = vmatprep.subr.mxu0 0.0
    %805 = vmatpush1.msra.mxu0 %v786
    %806 = vmatprep.subr.mxu0 0.0
    %807 = vmatpush1.msra.mxu0 %v787
    %808 = vmatprep.subr.mxu0 0.0
    %809 = vmatpush1.msra.mxu0 %v788
    %810 = vmatprep.subr.mxu0 0.0
    %811 = vmatpush1.msra.mxu0 %v789
    %812 = vmatprep.subr.mxu0 0.0
    %813 = vmatpush1.msra.mxu0 %v790
    %814 = vmatprep.subr.mxu0 0.0
    %815 = vmatpush1.msra.mxu0 %v791
    %816 = vmatprep.subr.mxu0 0.0
    %817 = vmatpush1.msra.mxu0 %v792
    %818 = vmatprep.subr.mxu0 0.0
    %819 = vmatpush1.msra.mxu0 %v793
    %820 = vmatprep.subr.mxu0 0.0
    %821 = vmatpush1.msra.mxu0 %v794
    %822 = vmatprep.subr.mxu0 0.0
    %823 = vmatpush1.msra.mxu0 %v795
    %824 = vmatprep.subr.mxu0 0.0
    %825 = vmatpush1.msra.mxu0 %v796
    %826 = vmatprep.subr.mxu0 0.0
    %827 = vmatpush1.msra.mxu0 %v797
    %828 = vmatprep.subr.mxu0 0.0
    %829 = vmatpush1.msra.mxu0 %v798
    %830 = vmatprep.subr.mxu0 0.0
    %831 = vmatpush1.msra.mxu0 %v799
    %832 = vmatprep.subr.mxu0 0.0
    %833 = vmatpush1.msra.mxu0 0.0
    %834 = vmatprep.subr.mxu0 0.0
    %835 = vmatpush1.msra.mxu0 0.0
    %836 = vmatprep.subr.mxu0 0.0
    %837 = vmatpush1.msra.mxu0 0.0
    %838 = vmatprep.subr.mxu0 0.0
    %839 = vmatpush1.msra.mxu0 0.0
    %840 = vmatprep.subr.mxu0 0.0
    %841 = vmatpush1.msra.mxu0 0.0
    %842 = vmatprep.subr.mxu0 0.0
    %843 = vmatpush1.msra.mxu0 0.0
    %844 = vmatprep.subr.mxu0 0.0
    %845 = vmatpush1.msra.mxu0 0.0
    %846 = vmatprep.subr.mxu0 0.0
    %847 = vmatpush1.msra.mxu0 0.0
    %848 = vmatprep.subr.mxu0 0.0
    %849 = vmatpush1.msra.mxu0 0.0
    %850 = vmatprep.subr.mxu0 0.0
    %851 = vmatpush1.msra.mxu0 0.0
    %852 = vmatprep.subr.mxu0 0.0
    %853 = vmatpush1.msra.mxu0 0.0
    %854 = vmatprep.subr.mxu0 0.0
    %855 = vmatpush1.msra.mxu0 0.0
    %856 = vmatprep.subr.mxu0 0.0
    %857 = vmatpush1.msra.mxu0 0.0
    %858 = vmatprep.subr.mxu0 0.0
    %859 = vmatpush1.msra.mxu0 0.0
    %860 = vmatprep.subr.mxu0 0.0
    %861 = vmatpush1.msra.mxu0 0.0
    %862 = vmatprep.subr.mxu0 0.0
    %863 = vmatpush1.msra.mxu0 0.0
    %864 = vmatprep.mubr.f32.mxu0 0.0
    %865 = vmatmul.mubr.f32.gmra.mrb[0].mxu0 %v782
    %v866 = vpop.f32.mrb[0].mxu0
    %v867 = vadd.f32 0.0, %v866
    %v868 = vpop.f32.mrb[0].mxu0
    %869 = vmatprep.mubr.f32.mxu0 0.0
    %870 = vmatmul.mubr.f32.gmra.mrb[0].mxu0 %v783
    %v871 = vpop.f32.mrb[0].mxu0
    %v872 = vadd.f32 0.0, %v871
    %v873 = vpop.f32.mrb[0].mxu0
    %874 = vdwg.mxu0
    %875 = vst [vmem:[#allocation8] sm:$0xff] %v867
    %876 = vst [vmem:[#allocation8 + $0x8] sm:$0xff] %v872
    // Predicated region
    $region58: #{tpu_custom_call.1} parent=1 // pred_check
      _
    $region59: #{tpu_custom_call.1} parent=1 // pred_check_branch
      %878 = sbr.rel (0) target = $region61
    $region60: #{tpu_custom_call.1} parent=1 // pred_region
      %s880 = ssub.s32 256, 256
      %881 = vsyncadd [#allocation4], %s880
      %s882 = sshll.u32 [#allocation8], 4
      %s883 = int_to_ptr.vmem [resolvable:$true] %s882
      %888 = dma.vmem_to_hbm [thread:$0]  %s883, 256, %s11, [#allocation4], 128, 128, 8
    $region61: #{tpu_custom_call.1} parent=1 // pred_fallthru
      _
    // Predicated region
    $region62: #{tpu_custom_call.1} parent=1 // pred_check
      _
    $region63: #{tpu_custom_call.1} parent=1 // pred_check_branch
      %890 = sbr.rel (0) target = $region65
    $region64: #{tpu_custom_call.1} parent=1 // pred_region
      %891 = dma.done [#allocation4], 256
    $region65: #{tpu_custom_call.1} parent=1 // pred_fallthru
      _
    %892 = vsyncpa [#allocation3], 1
    %893 = vsyncpa [#allocation6], 1
    %894 = vsyncpa [#allocation4], 1

</llo_original>
